<compile_context>
chip_gen: v7x
topology: tpu7x:2x2x1
jax: 0.10.0
libtpu: 0.0.40
codegen_flags: <defaults>
</compile_context>

<pallas_src>
import jax
import jax.numpy as jnp
from jax.experimental import pallas as pl
from jax.experimental.pallas import tpu as pltpu

NN_WIDTH = 30          # matches nn_width=30 default
NUM_HIDDEN = 2         # matches num_hidden=2 default
W_PAD = 32             # sublane-aligned (multiple of 8) padded hidden width
MAX_TILE_N = 1024      # lane-aligned rows (batch elements) per grid step


def _fcn_kernel(x_ref, t_ref, w1_ref, b1_ref, w2_ref, b2_ref, w3_ref, b3_ref,
                wl_ref, bl_ref, out_ref):
    """Full MLP forward for one batch tile, feature-major ([W_PAD, TILE_N])."""
    x = x_ref[...]                                   # (1, TN)   batch on lanes
    t = t_ref[...]                                   # (1, TN)
    w1 = w1_ref[...]                                 # (Wp, 2)   [out, in]

    # Layer 1: K=2 "matmul" done as two broadcast FMAs on the VPU.
    u = jnp.tanh(w1[:, 0:1] * x + w1[:, 1:2] * t + b1_ref[...])      # (Wp, TN)

    # Hidden layers: weights pre-transposed to [out, in] so this is W @ u (MXU,
    # fully 8-aligned 32x32 tiles).
    u = jnp.tanh(
        jnp.dot(w2_ref[...], u, preferred_element_type=jnp.float32)
        + b2_ref[...])                                               # (Wp, TN)
    u = jnp.tanh(
        jnp.dot(w3_ref[...], u, preferred_element_type=jnp.float32)
        + b3_ref[...])                                               # (Wp, TN)

    # Output projection (Wp -> 1): multiply + sublane reduce, lane-dense store.
    out_ref[...] = (
        jnp.sum(wl_ref[...] * u, axis=0, keepdims=True) + bl_ref[...])  # (1, TN)


def _choose_tile(n):
    """Lane-aligned batch tile; whole batch in one step when it is small."""
    n128 = ((n + 127) // 128) * 128
    return min(MAX_TILE_N, n128)


def _pad_rows(a, rows):
    """Zero-pad a 2-D array to `rows` rows (axis 0)."""
    return jnp.pad(a, ((0, rows - a.shape[0]), (0, 0)))


@jax.jit
def fcn_forward(x, t, params):
    """x, t: [N, 1] float32.  Returns u: [N, 1] float32."""
    n = x.shape[0]
    tile = _choose_tile(n)
    n_pad = ((n + tile - 1) // tile) * tile

    # Lane-dense, batch-on-lane inputs: [1, N_pad]; pad tail with zeros.
    x_l = jnp.pad(x.reshape(1, n).astype(jnp.float32), ((0, 0), (0, n_pad - n)))
    t_l = jnp.pad(t.reshape(1, n).astype(jnp.float32), ((0, 0), (0, n_pad - n)))

    # Feature-major, sublane-aligned parameter layout (cheap one-time
    # transposes / zero-pads in the wrapper; padded rows/cols contribute
    # exactly zero to every layer, so results are unchanged).
    w1_t = _pad_rows(params["w1"].T, W_PAD)                      # (Wp, 2)
    b1_t = _pad_rows(params["b1"].T, W_PAD)                      # (Wp, 1)
    w2_t = _pad_rows(
        jnp.pad(params["w2"].T, ((0, 0), (0, W_PAD - NN_WIDTH))), W_PAD)  # (Wp, Wp)
    b2_t = _pad_rows(params["b2"].T, W_PAD)                      # (Wp, 1)
    w3_t = _pad_rows(
        jnp.pad(params["w3"].T, ((0, 0), (0, W_PAD - NN_WIDTH))), W_PAD)  # (Wp, Wp)
    b3_t = _pad_rows(params["b3"].T, W_PAD)                      # (Wp, 1)
    wl_c = _pad_rows(params["wl"], W_PAD)                        # (Wp, 1)
    bl_s = params["bl"]                                          # (1, 1)

    grid = (n_pad // tile,)
    full = lambda arr: pl.BlockSpec(arr.shape, lambda i: (0, 0))

    out = pl.pallas_call(
        _fcn_kernel,
        out_shape=jax.ShapeDtypeStruct((1, n_pad), jnp.float32),
        grid=grid,
        in_specs=[
            pl.BlockSpec((1, tile), lambda i: (0, i)),   # x  (batch on lanes)
            pl.BlockSpec((1, tile), lambda i: (0, i)),   # t
            full(w1_t), full(b1_t),                      # layer_first
            full(w2_t), full(b2_t),                      # hidden[0]
            full(w3_t), full(b3_t),                      # hidden[1]
            full(wl_c), full(bl_s),                      # layer_last
        ],
        out_specs=pl.BlockSpec((1, tile), lambda i: (0, i)),
        compiler_params=pltpu.CompilerParams(
            dimension_semantics=("parallel",)),
    )(x_l, t_l, w1_t, b1_t, w2_t, b2_t, w3_t, b3_t, wl_c, bl_s)

    # Back to the module's [N, 1] batch-major output.
    return out[0, :n].reshape(n, 1)


def init_params(key, width=NN_WIDTH):
    """Deterministic synthetic parameters with the module's shapes."""
    ks = jax.random.split(key, 8)

    def lin(kw, kb, fan_in, fan_out):
        # PyTorch-Linear-style uniform init bound: 1/sqrt(fan_in)
        bound = 1.0 / jnp.sqrt(jnp.float32(fan_in))
        w = jax.random.uniform(kw, (fan_in, fan_out), jnp.float32, -bound, bound)
        b = jax.random.uniform(kb, (1, fan_out), jnp.float32, -bound, bound)
        return w, b

    w1, b1 = lin(ks[0], ks[1], 2, width)
    w2, b2 = lin(ks[2], ks[3], width, width)
    w3, b3 = lin(ks[4], ks[5], width, width)
    wl, bl = lin(ks[6], ks[7], width, 1)
    return dict(w1=w1, b1=b1, w2=w2, b2=b2, w3=w3, b3=b3, wl=wl, bl=bl)


def fcn_reference(x, t, p):
    """Pure-JAX reference for correctness check (mirrors the PyTorch forward)."""
    xt = jnp.concatenate([x, t], axis=1)
    u = jnp.tanh(xt @ p["w1"] + p["b1"])
    u = jnp.tanh(u @ p["w2"] + p["b2"])
    u = jnp.tanh(u @ p["w3"] + p["b3"])
    return u @ p["wl"] + p["bl"]


if __name__ == "__main__":
    key = jax.random.PRNGKey(0)
    kp, kt = jax.random.split(key, 2)

    # Shapes consistent with the module's usage: 500 collocation points,
    # x = linspace(0, 20, 500), t in [0, 1].
    N = 500
    params = init_params(kp)
    x = jnp.linspace(0.0, 20.0, N, dtype=jnp.float32).reshape(N, 1)
    t = jax.random.uniform(kt, (N, 1), jnp.float32, 0.0, 1.0)

    out = fcn_forward(x, t, params)
    out = jax.block_until_ready(out)

    ref = fcn_reference(x, t, params)
    assert out.shape == (N, 1)
    assert jnp.allclose(out, ref, atol=1e-4, rtol=1e-4), float(
        jnp.max(jnp.abs(out - ref)))

    print("KERNEL_OK")
</pallas_src>

<mosaic_0001>
module attributes {stable_mosaic.version = 11 : i64} {
  func.func @_fcn_kernel(%arg0: i32, %arg1: memref<1x512xf32, #tpu.memory_space<vmem>>, %arg2: memref<1x512xf32, #tpu.memory_space<vmem>>, %arg3: memref<32x2xf32, #tpu.memory_space<vmem>>, %arg4: memref<32x1xf32, #tpu.memory_space<vmem>>, %arg5: memref<32x32xf32, #tpu.memory_space<vmem>>, %arg6: memref<32x1xf32, #tpu.memory_space<vmem>>, %arg7: memref<32x32xf32, #tpu.memory_space<vmem>>, %arg8: memref<32x1xf32, #tpu.memory_space<vmem>>, %arg9: memref<32x1xf32, #tpu.memory_space<vmem>>, %arg10: memref<1x1xf32, #tpu.memory_space<vmem>>, %arg11: memref<1x512xf32, #tpu.memory_space<vmem>>) attributes {dimension_semantics = [#tpu.dimension_semantics<parallel>], iteration_bounds = array<i64: 1>, scalar_prefetch = 0 : i64, scratch_operands = 0 : i64, tpu.core_type = #tpu.core_type<tc>, window_params = [{transform_indices = @transform_0, window_bounds = array<i64: 1, 512>}, {transform_indices = @transform_1, window_bounds = array<i64: 1, 512>}, {pipeline_mode = #tpu.pipeline_mode<synchronous>, transform_indices = @transform_2, window_bounds = array<i64: 32, 2>}, {pipeline_mode = #tpu.pipeline_mode<synchronous>, transform_indices = @transform_3, window_bounds = array<i64: 32, 1>}, {pipeline_mode = #tpu.pipeline_mode<synchronous>, transform_indices = @transform_4, window_bounds = array<i64: 32, 32>}, {pipeline_mode = #tpu.pipeline_mode<synchronous>, transform_indices = @transform_5, window_bounds = array<i64: 32, 1>}, {pipeline_mode = #tpu.pipeline_mode<synchronous>, transform_indices = @transform_6, window_bounds = array<i64: 32, 32>}, {pipeline_mode = #tpu.pipeline_mode<synchronous>, transform_indices = @transform_7, window_bounds = array<i64: 32, 1>}, {pipeline_mode = #tpu.pipeline_mode<synchronous>, transform_indices = @transform_8, window_bounds = array<i64: 32, 1>}, {pipeline_mode = #tpu.pipeline_mode<synchronous>, transform_indices = @transform_9, window_bounds = array<i64: 1, 1>}, {transform_indices = @transform_10, window_bounds = array<i64: 1, 512>}]} {
    %c0 = arith.constant 0 : index
    %c0_0 = arith.constant 0 : index
    %0 = vector.load %arg1[%c0, %c0_0] : memref<1x512xf32, #tpu.memory_space<vmem>>, vector<1x512xf32>
    %c0_1 = arith.constant 0 : index
    %c0_2 = arith.constant 0 : index
    %1 = vector.load %arg2[%c0_1, %c0_2] : memref<1x512xf32, #tpu.memory_space<vmem>>, vector<1x512xf32>
    %c0_3 = arith.constant 0 : index
    %c0_4 = arith.constant 0 : index
    %2 = vector.load %arg3[%c0_3, %c0_4] : memref<32x2xf32, #tpu.memory_space<vmem>>, vector<32x2xf32>
    %3 = vector.extract_strided_slice %2 {offsets = [0, 0], sizes = [32, 1], strides = [1, 1]} : vector<32x2xf32> to vector<32x1xf32>
    %4 = vector.broadcast %3 : vector<32x1xf32> to vector<32x512xf32>
    %5 = vector.broadcast %0 : vector<1x512xf32> to vector<32x512xf32>
    %6 = arith.mulf %4, %5 : vector<32x512xf32>
    %7 = vector.extract_strided_slice %2 {offsets = [0, 1], sizes = [32, 1], strides = [1, 1]} : vector<32x2xf32> to vector<32x1xf32>
    %8 = vector.broadcast %7 : vector<32x1xf32> to vector<32x512xf32>
    %9 = vector.broadcast %1 : vector<1x512xf32> to vector<32x512xf32>
    %10 = arith.mulf %8, %9 : vector<32x512xf32>
    %11 = arith.addf %6, %10 : vector<32x512xf32>
    %c0_5 = arith.constant 0 : index
    %c0_6 = arith.constant 0 : index
    %12 = vector.load %arg4[%c0_5, %c0_6] : memref<32x1xf32, #tpu.memory_space<vmem>>, vector<32x1xf32>
    %13 = vector.broadcast %12 : vector<32x1xf32> to vector<32x512xf32>
    %14 = arith.addf %11, %13 : vector<32x512xf32>
    %15 = math.tanh %14 : vector<32x512xf32>
    %c0_7 = arith.constant 0 : index
    %c0_8 = arith.constant 0 : index
    %16 = vector.load %arg5[%c0_7, %c0_8] : memref<32x32xf32, #tpu.memory_space<vmem>>, vector<32x32xf32>
    %cst = arith.constant dense<0.000000e+00> : vector<32x512xf32>
    %17 = tpu.matmul %16, %15, %cst {dimension_numbers = #tpu.dot_dimension_numbers<[1], [0], [0], [1], [0, 0, 1, 1], [], []>} : vector<32x32xf32>, vector<32x512xf32>, vector<32x512xf32> -> vector<32x512xf32>
    %c0_9 = arith.constant 0 : index
    %c0_10 = arith.constant 0 : index
    %18 = vector.load %arg6[%c0_9, %c0_10] : memref<32x1xf32, #tpu.memory_space<vmem>>, vector<32x1xf32>
    %19 = vector.broadcast %18 : vector<32x1xf32> to vector<32x512xf32>
    %20 = arith.addf %17, %19 : vector<32x512xf32>
    %21 = math.tanh %20 : vector<32x512xf32>
    %c0_11 = arith.constant 0 : index
    %c0_12 = arith.constant 0 : index
    %22 = vector.load %arg7[%c0_11, %c0_12] : memref<32x32xf32, #tpu.memory_space<vmem>>, vector<32x32xf32>
    %cst_13 = arith.constant dense<0.000000e+00> : vector<32x512xf32>
    %23 = tpu.matmul %22, %21, %cst_13 {dimension_numbers = #tpu.dot_dimension_numbers<[1], [0], [0], [1], [0, 0, 1, 1], [], []>} : vector<32x32xf32>, vector<32x512xf32>, vector<32x512xf32> -> vector<32x512xf32>
    %c0_14 = arith.constant 0 : index
    %c0_15 = arith.constant 0 : index
    %24 = vector.load %arg8[%c0_14, %c0_15] : memref<32x1xf32, #tpu.memory_space<vmem>>, vector<32x1xf32>
    %25 = vector.broadcast %24 : vector<32x1xf32> to vector<32x512xf32>
    %26 = arith.addf %23, %25 : vector<32x512xf32>
    %27 = math.tanh %26 : vector<32x512xf32>
    %c0_16 = arith.constant 0 : index
    %c0_17 = arith.constant 0 : index
    %28 = vector.load %arg9[%c0_16, %c0_17] : memref<32x1xf32, #tpu.memory_space<vmem>>, vector<32x1xf32>
    %29 = vector.broadcast %28 : vector<32x1xf32> to vector<32x512xf32>
    %30 = arith.mulf %29, %27 : vector<32x512xf32>
    %cst_18 = arith.constant dense<0.000000e+00> : vector<512xf32>
    %31 = vector.multi_reduction <add>, %30, %cst_18 [0] : vector<32x512xf32> to vector<512xf32>
    %32 = vector.shape_cast %31 : vector<512xf32> to vector<1x512xf32>
    %c0_19 = arith.constant 0 : index
    %c0_20 = arith.constant 0 : index
    %33 = vector.load %arg10[%c0_19, %c0_20] : memref<1x1xf32, #tpu.memory_space<vmem>>, vector<1x1xf32>
    %34 = vector.broadcast %33 : vector<1x1xf32> to vector<1x512xf32>
    %35 = arith.addf %32, %34 : vector<1x512xf32>
    %c0_21 = arith.constant 0 : index
    %c0_22 = arith.constant 0 : index
    %36 = vector.load %arg11[%c0_21, %c0_22] : memref<1x512xf32, #tpu.memory_space<vmem>>, vector<1x512xf32>
    tpu.vector_store %arg11[%c0_21, %c0_22], %35 {strides = array<i32>} : memref<1x512xf32, #tpu.memory_space<vmem>>, vector<1x512xf32>,
    return
  }
  func.func @transform_0(%arg0: i32) -> (i32, i32) {
    %c0_i32 = arith.constant 0 : i32
    %c0_i32_0 = arith.constant 0 : i32
    return %c0_i32, %arg0 : i32, i32
  }
  func.func @transform_1(%arg0: i32) -> (i32, i32) {
    %c0_i32 = arith.constant 0 : i32
    %c0_i32_0 = arith.constant 0 : i32
    return %c0_i32, %arg0 : i32, i32
  }
  func.func @transform_2(%arg0: i32) -> (i32, i32) {
    %c0_i32 = arith.constant 0 : i32
    %c0_i32_0 = arith.constant 0 : i32
    %c0_i32_1 = arith.constant 0 : i32
    return %c0_i32, %c0_i32_0 : i32, i32
  }
  func.func @transform_3(%arg0: i32) -> (i32, i32) {
    %c0_i32 = arith.constant 0 : i32
    %c0_i32_0 = arith.constant 0 : i32
    %c0_i32_1 = arith.constant 0 : i32
    return %c0_i32, %c0_i32_0 : i32, i32
  }
  func.func @transform_4(%arg0: i32) -> (i32, i32) {
    %c0_i32 = arith.constant 0 : i32
    %c0_i32_0 = arith.constant 0 : i32
    %c0_i32_1 = arith.constant 0 : i32
    return %c0_i32, %c0_i32_0 : i32, i32
  }
  func.func @transform_5(%arg0: i32) -> (i32, i32) {
    %c0_i32 = arith.constant 0 : i32
    %c0_i32_0 = arith.constant 0 : i32
    %c0_i32_1 = arith.constant 0 : i32
    return %c0_i32, %c0_i32_0 : i32, i32
  }
  func.func @transform_6(%arg0: i32) -> (i32, i32) {
    %c0_i32 = arith.constant 0 : i32
    %c0_i32_0 = arith.constant 0 : i32
    %c0_i32_1 = arith.constant 0 : i32
    return %c0_i32, %c0_i32_0 : i32, i32
  }
  func.func @transform_7(%arg0: i32) -> (i32, i32) {
    %c0_i32 = arith.constant 0 : i32
    %c0_i32_0 = arith.constant 0 : i32
    %c0_i32_1 = arith.constant 0 : i32
    return %c0_i32, %c0_i32_0 : i32, i32
  }
  func.func @transform_8(%arg0: i32) -> (i32, i32) {
    %c0_i32 = arith.constant 0 : i32
    %c0_i32_0 = arith.constant 0 : i32
    %c0_i32_1 = arith.constant 0 : i32
    return %c0_i32, %c0_i32_0 : i32, i32
  }
  func.func @transform_9(%arg0: i32) -> (i32, i32) {
    %c0_i32 = arith.constant 0 : i32
    %c0_i32_0 = arith.constant 0 : i32
    %c0_i32_1 = arith.constant 0 : i32
    return %c0_i32, %c0_i32_0 : i32, i32
  }
  func.func @transform_10(%arg0: i32) -> (i32, i32) {
    %c0_i32 = arith.constant 0 : i32
    %c0_i32_0 = arith.constant 0 : i32
    return %c0_i32, %arg0 : i32, i32
  }
}

</mosaic_0001>

<llo_original>
// kernel: fcn_forward.1
$region0: #{fcn_forward.1}
  #allocation0 [shape = 'u32[]', space=smem, size = 0x4, offset = 0x4, fixed_abs, tag = 'smem constant byte address 0x4 - core index']
  #allocation1 [shape = 'u32[144,128]{1,0:T(1,128)}', space=vmem, size = 0x12000, scoped, tag = 'internal scratch']
  #allocation2 [shape = 'f32[1,1]{1,0:T(1,128)S(1)}', space=vmem, size = 0x200, scoped, tag = 'scoped memory for fcn_forward.1']
  %s0 = inlined_call_operand.vmem [shape: f32[1,512], index: 0, kind: input, shape index: {}]
  %s1 = inlined_call_operand.vmem [shape: f32[1,512], index: 1, kind: input, shape index: {}]
  %s2 = inlined_call_operand.vmem [shape: f32[32,2], index: 2, kind: input, shape index: {}]
  %s3 = inlined_call_operand.vmem [shape: f32[32,1], index: 3, kind: input, shape index: {}]
  %s4 = inlined_call_operand.vmem [shape: f32[32,32], index: 4, kind: input, shape index: {}]
  %s5 = inlined_call_operand.vmem [shape: f32[32,1], index: 5, kind: input, shape index: {}]
  %s6 = inlined_call_operand.vmem [shape: f32[32,32], index: 6, kind: input, shape index: {}]
  %s7 = inlined_call_operand.vmem [shape: f32[32,1], index: 7, kind: input, shape index: {}]
  %s8 = inlined_call_operand.vmem [shape: f32[32,1], index: 8, kind: input, shape index: {}]
  %s9 = inlined_call_operand.<no memory space> [shape: f32[1,1], index: 9, kind: input, shape index: {}]
  %s10 = inlined_call_operand.vmem [shape: f32[1,512], index: 10, kind: output, shape index: {}]
  %s11 = sld [smem:[#allocation0]]
  $region50: #{fcn_forward.1} parent=0
    _
  %s13 = ssub.s32 1, %s11
  %s14 = scalar_select 0, %s13, %s11
  %v15 = vstv %s9
  %16 = vst [vmem:[#allocation2] sm:$0x1] %v15
  // Predicated region
  $region2: #{fcn_forward.1} parent=0 // pred_check
    _
  $region3: #{fcn_forward.1} parent=0 // pred_check_branch
    %18 = sbr.rel (0) target = $region5
  $region4: #{fcn_forward.1} parent=0 // pred_region
    _
  $region5: #{fcn_forward.1} parent=0 // pred_fallthru
    _
  // Predicated region
  $region6: #{fcn_forward.1} parent=0 // pred_check
    _
  $region7: #{fcn_forward.1} parent=0 // pred_check_branch
    %20 = sbr.rel (0) target = $region9
  $region8: #{fcn_forward.1} parent=0 // pred_region
    _
  $region9: #{fcn_forward.1} parent=0 // pred_fallthru
    _
  // Predicated region
  $region10: #{fcn_forward.1} parent=0 // pred_check
    _
  $region11: #{fcn_forward.1} parent=0 // pred_check_branch
    %22 = sbr.rel (0) target = $region13
  $region12: #{fcn_forward.1} parent=0 // pred_region
    _
  $region13: #{fcn_forward.1} parent=0 // pred_fallthru
    _
  // Predicated region
  $region14: #{fcn_forward.1} parent=0 // pred_check
    _
  $region15: #{fcn_forward.1} parent=0 // pred_check_branch
    %24 = sbr.rel (0) target = $region17
  $region16: #{fcn_forward.1} parent=0 // pred_region
    _
  $region17: #{fcn_forward.1} parent=0 // pred_fallthru
    _
  // Predicated region
  $region18: #{fcn_forward.1} parent=0 // pred_check
    _
  $region19: #{fcn_forward.1} parent=0 // pred_check_branch
    %26 = sbr.rel (0) target = $region21
  $region20: #{fcn_forward.1} parent=0 // pred_region
    _
  $region21: #{fcn_forward.1} parent=0 // pred_fallthru
    _
  // Predicated region
  $region22: #{fcn_forward.1} parent=0 // pred_check
    _
  $region23: #{fcn_forward.1} parent=0 // pred_check_branch
    %28 = sbr.rel (0) target = $region25
  $region24: #{fcn_forward.1} parent=0 // pred_region
    _
  $region25: #{fcn_forward.1} parent=0 // pred_fallthru
    _
  // Predicated region
  $region26: #{fcn_forward.1} parent=0 // pred_check
    _
  $region27: #{fcn_forward.1} parent=0 // pred_check_branch
    %30 = sbr.rel (0) target = $region29
  $region28: #{fcn_forward.1} parent=0 // pred_region
    _
  $region29: #{fcn_forward.1} parent=0 // pred_fallthru
    _
  // Predicated region
  $region30: #{fcn_forward.1} parent=0 // pred_check
    _
  $region31: #{fcn_forward.1} parent=0 // pred_check_branch
    %32 = sbr.rel (0) target = $region33
  $region32: #{fcn_forward.1} parent=0 // pred_region
    _
  $region33: #{fcn_forward.1} parent=0 // pred_fallthru
    _
  // Predicated region
  $region34: #{fcn_forward.1} parent=0 // pred_check
    _
  $region35: #{fcn_forward.1} parent=0 // pred_check_branch
    %34 = sbr.rel (0) target = $region37
  $region36: #{fcn_forward.1} parent=0 // pred_region
    _
  $region37: #{fcn_forward.1} parent=0 // pred_fallthru
    _
  // Predicated region
  $region38: #{fcn_forward.1} parent=0 // pred_check
    _
  $region39: #{fcn_forward.1} parent=0 // pred_check_branch
    %36 = sbr.rel (0) target = $region41
  $region40: #{fcn_forward.1} parent=0 // pred_region
    _
  $region41: #{fcn_forward.1} parent=0 // pred_fallthru
    _
  %v37 = vld [vmem:[%s0] sm:$0xf]
  %v38 = vld [vmem:[%s1] sm:$0xf]
  %v39 = vld [vmem:[%s2] sm:$0xff]
  %v40 = vld [vmem:[%s2 + $0x8] sm:$0xff]
  %v41 = vld [vmem:[%s2 + $0x10] sm:$0xff]
  %v42 = vld [vmem:[%s2 + $0x18] sm:$0xff]
  %44 = vset.pattern.permute.xlu0 0
  %45 = vperm.xlu0 %44, %v39
  %v46 = vpop.permute.xlu0 %45
  %49 = vset.pattern.permute.xlu0 0
  %50 = vperm.xlu0 %49, %v40
  %v51 = vpop.permute.xlu0 %50
  %54 = vset.pattern.permute.xlu0 0
  %55 = vperm.xlu0 %54, %v41
  %v56 = vpop.permute.xlu0 %55
  %59 = vset.pattern.permute.xlu0 0
  %60 = vperm.xlu0 %59, %v42
  %v61 = vpop.permute.xlu0 %60
  %v64 = vlaneseq
  %v65 = vshrl.u32 %v64, 7
  %v66 = vsub.s32 0, %v65
  %v67 = vrot.slane %v37, %v66
  %v68 = vlaneseq
  %v69 = vshrl.u32 %v68, 7
  %v70 = vsub.s32 1, %v69
  %v71 = vrot.slane %v37, %v70
  %v72 = vlaneseq
  %v73 = vshrl.u32 %v72, 7
  %v74 = vsub.s32 2, %v73
  %v75 = vrot.slane %v37, %v74
  %v76 = vlaneseq
  %v77 = vshrl.u32 %v76, 7
  %v78 = vsub.s32 3, %v77
  %v79 = vrot.slane %v37, %v78
  %v84 = vmul.f32 %v46, %v67
  %v85 = vmul.f32 %v46, %v71
  %v86 = vmul.f32 %v46, %v75
  %v87 = vmul.f32 %v46, %v79
  %v88 = vmul.f32 %v51, %v67
  %v89 = vmul.f32 %v51, %v71
  %v90 = vmul.f32 %v51, %v75
  %v91 = vmul.f32 %v51, %v79
  %v92 = vmul.f32 %v56, %v67
  %v93 = vmul.f32 %v56, %v71
  %v94 = vmul.f32 %v56, %v75
  %v95 = vmul.f32 %v56, %v79
  %v96 = vmul.f32 %v61, %v67
  %v97 = vmul.f32 %v61, %v71
  %v98 = vmul.f32 %v61, %v75
  %v99 = vmul.f32 %v61, %v79
  %100 = vset.pattern.permute.xlu0 1
  %101 = vperm.xlu0 %100, %v39
  %v102 = vpop.permute.xlu0 %101
  %104 = vset.pattern.permute.xlu0 1
  %105 = vperm.xlu0 %104, %v40
  %v106 = vpop.permute.xlu0 %105
  %108 = vset.pattern.permute.xlu0 1
  %109 = vperm.xlu0 %108, %v41
  %v110 = vpop.permute.xlu0 %109
  %112 = vset.pattern.permute.xlu0 1
  %113 = vperm.xlu0 %112, %v42
  %v114 = vpop.permute.xlu0 %113
  %v117 = vlaneseq
  %v118 = vshrl.u32 %v117, 7
  %v119 = vsub.s32 0, %v118
  %v120 = vrot.slane %v38, %v119
  %v121 = vlaneseq
  %v122 = vshrl.u32 %v121, 7
  %v123 = vsub.s32 1, %v122
  %v124 = vrot.slane %v38, %v123
  %v125 = vlaneseq
  %v126 = vshrl.u32 %v125, 7
  %v127 = vsub.s32 2, %v126
  %v128 = vrot.slane %v38, %v127
  %v129 = vlaneseq
  %v130 = vshrl.u32 %v129, 7
  %v131 = vsub.s32 3, %v130
  %v132 = vrot.slane %v38, %v131
  %v137 = vmul.f32 %v102, %v120
  %v138 = vmul.f32 %v102, %v124
  %v139 = vmul.f32 %v102, %v128
  %v140 = vmul.f32 %v102, %v132
  %v141 = vmul.f32 %v106, %v120
  %v142 = vmul.f32 %v106, %v124
  %v143 = vmul.f32 %v106, %v128
  %v144 = vmul.f32 %v106, %v132
  %v145 = vmul.f32 %v110, %v120
  %v146 = vmul.f32 %v110, %v124
  %v147 = vmul.f32 %v110, %v128
  %v148 = vmul.f32 %v110, %v132
  %v149 = vmul.f32 %v114, %v120
  %v150 = vmul.f32 %v114, %v124
  %v151 = vmul.f32 %v114, %v128
  %v152 = vmul.f32 %v114, %v132
  %v153 = vadd.f32 %v84, %v137
  %v154 = vadd.f32 %v85, %v138
  %v155 = vadd.f32 %v86, %v139
  %v156 = vadd.f32 %v87, %v140
  %v157 = vadd.f32 %v88, %v141
  %v158 = vadd.f32 %v89, %v142
  %v159 = vadd.f32 %v90, %v143
  %v160 = vadd.f32 %v91, %v144
  %v161 = vadd.f32 %v92, %v145
  %v162 = vadd.f32 %v93, %v146
  %v163 = vadd.f32 %v94, %v147
  %v164 = vadd.f32 %v95, %v148
  %v165 = vadd.f32 %v96, %v149
  %v166 = vadd.f32 %v97, %v150
  %v167 = vadd.f32 %v98, %v151
  %v168 = vadd.f32 %v99, %v152
  %v169 = vld [vmem:[%s3] sm:$0xff]
  %v170 = vld [vmem:[%s3 + $0x8] sm:$0xff]
  %v171 = vld [vmem:[%s3 + $0x10] sm:$0xff]
  %v172 = vld [vmem:[%s3 + $0x18] sm:$0xff]
  %174 = vset.pattern.permute.xlu0 0
  %175 = vperm.xlu0 %174, %v169
  %v176 = vpop.permute.xlu0 %175
  %179 = vset.pattern.permute.xlu0 0
  %180 = vperm.xlu0 %179, %v170
  %v181 = vpop.permute.xlu0 %180
  %184 = vset.pattern.permute.xlu0 0
  %185 = vperm.xlu0 %184, %v171
  %v186 = vpop.permute.xlu0 %185
  %189 = vset.pattern.permute.xlu0 0
  %190 = vperm.xlu0 %189, %v172
  %v191 = vpop.permute.xlu0 %190
  %v193 = vadd.f32 %v153, %v176
  %v194 = vadd.f32 %v154, %v176
  %v195 = vadd.f32 %v155, %v176
  %v196 = vadd.f32 %v156, %v176
  %v197 = vadd.f32 %v157, %v181
  %v198 = vadd.f32 %v158, %v181
  %v199 = vadd.f32 %v159, %v181
  %v200 = vadd.f32 %v160, %v181
  %v201 = vadd.f32 %v161, %v186
  %v202 = vadd.f32 %v162, %v186
  %v203 = vadd.f32 %v163, %v186
  %v204 = vadd.f32 %v164, %v186
  %v205 = vadd.f32 %v165, %v191
  %v206 = vadd.f32 %v166, %v191
  %v207 = vadd.f32 %v167, %v191
  %v208 = vadd.f32 %v168, %v191
  %v209 = vtanh.pop %v193
  %v210 = vtanh.pop %v194
  %v211 = vtanh.pop %v195
  %v212 = vtanh.pop %v196
  %v213 = vtanh.pop %v197
  %v214 = vtanh.pop %v198
  %v215 = vtanh.pop %v199
  %v216 = vtanh.pop %v200
  %v217 = vtanh.pop %v201
  %v218 = vtanh.pop %v202
  %v219 = vtanh.pop %v203
  %v220 = vtanh.pop %v204
  %v221 = vtanh.pop %v205
  %v222 = vtanh.pop %v206
  %v223 = vtanh.pop %v207
  %v224 = vtanh.pop %v208
  %v225 = vld [vmem:[%s4] sm:$0xff]
  %v226 = vld [vmem:[%s4 + $0x8] sm:$0xff]
  %v227 = vld [vmem:[%s4 + $0x10] sm:$0xff]
  %v228 = vld [vmem:[%s4 + $0x18] sm:$0xff]
  %v229 = vld [vmem:[%s5] sm:$0xff]
  %v230 = vld [vmem:[%s5 + $0x8] sm:$0xff]
  %v231 = vld [vmem:[%s5 + $0x10] sm:$0xff]
  %v232 = vld [vmem:[%s5 + $0x18] sm:$0xff]
  %234 = vset.pattern.permute.xlu0 0
  %235 = vperm.xlu0 %234, %v229
  %v236 = vpop.permute.xlu0 %235
  %239 = vset.pattern.permute.xlu0 0
  %240 = vperm.xlu0 %239, %v230
  %v241 = vpop.permute.xlu0 %240
  %244 = vset.pattern.permute.xlu0 0
  %245 = vperm.xlu0 %244, %v231
  %v246 = vpop.permute.xlu0 %245
  %249 = vset.pattern.permute.xlu0 0
  %250 = vperm.xlu0 %249, %v232
  %v251 = vpop.permute.xlu0 %250
  %vm253 = vcmask 261120
  %v255 = vsel %vm253, %v225, 0
  %v258 = vsel %vm253, %v226, 0
  %v261 = vsel %vm253, %v227, 0
  %v264 = vsel %vm253, %v228, 0
  %266 = vmatprep.subr.mxu0 %v210
  %267 = vmatpush1.msra.mxu0 %v209
  %268 = vmatprep.subr.mxu0 %v214
  %269 = vmatpush1.msra.mxu0 %v213
  %270 = vmatprep.subr.mxu0 %v218
  %271 = vmatpush1.msra.mxu0 %v217
  %272 = vmatprep.subr.mxu0 %v222
  %273 = vmatpush1.msra.mxu0 %v221
  %274 = vmatprep.subr.mxu0 0.0
  %275 = vmatpush1.msra.mxu0 0.0
  %276 = vmatprep.subr.mxu0 0.0
  %277 = vmatpush1.msra.mxu0 0.0
  %278 = vmatprep.subr.mxu0 0.0
  %279 = vmatpush1.msra.mxu0 0.0
  %280 = vmatprep.subr.mxu0 0.0
  %281 = vmatpush1.msra.mxu0 0.0
  %282 = vmatprep.subr.mxu0 0.0
  %283 = vmatpush1.msra.mxu0 0.0
  %284 = vmatprep.subr.mxu0 0.0
  %285 = vmatpush1.msra.mxu0 0.0
  %286 = vmatprep.subr.mxu0 0.0
  %287 = vmatpush1.msra.mxu0 0.0
  %288 = vmatprep.subr.mxu0 0.0
  %289 = vmatpush1.msra.mxu0 0.0
  %290 = vmatprep.subr.mxu0 0.0
  %291 = vmatpush1.msra.mxu0 0.0
  %292 = vmatprep.subr.mxu0 0.0
  %293 = vmatpush1.msra.mxu0 0.0
  %294 = vmatprep.subr.mxu0 0.0
  %295 = vmatpush1.msra.mxu0 0.0
  %296 = vmatprep.subr.mxu0 0.0
  %297 = vmatpush1.msra.mxu0 0.0
  %298 = vmatprep.subr.mxu0 0.0
  %299 = vmatpush1.msra.mxu0 0.0
  %300 = vmatprep.subr.mxu0 0.0
  %301 = vmatpush1.msra.mxu0 0.0
  %302 = vmatprep.subr.mxu0 0.0
  %303 = vmatpush1.msra.mxu0 0.0
  %304 = vmatprep.subr.mxu0 0.0
  %305 = vmatpush1.msra.mxu0 0.0
  %306 = vmatprep.subr.mxu0 0.0
  %307 = vmatpush1.msra.mxu0 0.0
  %308 = vmatprep.subr.mxu0 0.0
  %309 = vmatpush1.msra.mxu0 0.0
  %310 = vmatprep.subr.mxu0 0.0
  %311 = vmatpush1.msra.mxu0 0.0
  %312 = vmatprep.subr.mxu0 0.0
  %313 = vmatpush1.msra.mxu0 0.0
  %314 = vmatprep.subr.mxu0 0.0
  %315 = vmatpush1.msra.mxu0 0.0
  %316 = vmatprep.subr.mxu0 0.0
  %317 = vmatpush1.msra.mxu0 0.0
  %318 = vmatprep.subr.mxu0 0.0
  %319 = vmatpush1.msra.mxu0 0.0
  %320 = vmatprep.subr.mxu0 0.0
  %321 = vmatpush1.msra.mxu0 0.0
  %322 = vmatprep.subr.mxu0 0.0
  %323 = vmatpush1.msra.mxu0 0.0
  %324 = vmatprep.subr.mxu0 0.0
  %325 = vmatpush1.msra.mxu0 0.0
  %326 = vmatprep.subr.mxu0 0.0
  %327 = vmatpush1.msra.mxu0 0.0
  %328 = vmatprep.subr.mxu0 0.0
  %329 = vmatpush1.msra.mxu0 0.0
  %330 = vmatprep.mubr.f32.mxu0 0.0
  %331 = vmatmul.mubr.f32.gmra.mrb[0].mxu0 %v255
  %v332 = vpop.f32.mrb[0].mxu0
  %v333 = vadd.f32 %v236, %v332
  %v334 = vpop.f32.mrb[0].mxu0
  %v335 = vadd.f32 %v236, %v334
  %336 = vmatprep.mubr.f32.mxu0 0.0
  %337 = vmatmul.mubr.f32.gmra.mrb[0].mxu0 %v258
  %v338 = vpop.f32.mrb[0].mxu0
  %v339 = vadd.f32 %v241, %v338
  %v340 = vpop.f32.mrb[0].mxu0
  %v341 = vadd.f32 %v241, %v340
  %342 = vmatprep.mubr.f32.mxu0 0.0
  %343 = vmatmul.mubr.f32.gmra.mrb[0].mxu0 %v261
  %v344 = vpop.f32.mrb[0].mxu0
  %v345 = vadd.f32 %v246, %v344
  %v346 = vpop.f32.mrb[0].mxu0
  %v347 = vadd.f32 %v246, %v346
  %348 = vmatprep.mubr.f32.mxu0 0.0
  %349 = vmatmul.mubr.f32.gmra.mrb[0].mxu0 %v264
  %v350 = vpop.f32.mrb[0].mxu0
  %v351 = vadd.f32 %v251, %v350
  %v352 = vpop.f32.mrb[0].mxu0
  %v353 = vadd.f32 %v251, %v352
  %354 = vdwg.mxu0
  %355 = vmatprep.subr.mxu0 %v212
  %356 = vmatpush1.msra.mxu0 %v211
  %357 = vmatprep.subr.mxu0 %v216
  %358 = vmatpush1.msra.mxu0 %v215
  %359 = vmatprep.subr.mxu0 %v220
  %360 = vmatpush1.msra.mxu0 %v219
  %361 = vmatprep.subr.mxu0 %v224
  %362 = vmatpush1.msra.mxu0 %v223
  %363 = vmatprep.subr.mxu0 0.0
  %364 = vmatpush1.msra.mxu0 0.0
  %365 = vmatprep.subr.mxu0 0.0
  %366 = vmatpush1.msra.mxu0 0.0
  %367 = vmatprep.subr.mxu0 0.0
  %368 = vmatpush1.msra.mxu0 0.0
  %369 = vmatprep.subr.mxu0 0.0
  %370 = vmatpush1.msra.mxu0 0.0
  %371 = vmatprep.subr.mxu0 0.0
  %372 = vmatpush1.msra.mxu0 0.0
  %373 = vmatprep.subr.mxu0 0.0
  %374 = vmatpush1.msra.mxu0 0.0
  %375 = vmatprep.subr.mxu0 0.0
  %376 = vmatpush1.msra.mxu0 0.0
  %377 = vmatprep.subr.mxu0 0.0
  %378 = vmatpush1.msra.mxu0 0.0
  %379 = vmatprep.subr.mxu0 0.0
  %380 = vmatpush1.msra.mxu0 0.0
  %381 = vmatprep.subr.mxu0 0.0
  %382 = vmatpush1.msra.mxu0 0.0
  %383 = vmatprep.subr.mxu0 0.0
  %384 = vmatpush1.msra.mxu0 0.0
  %385 = vmatprep.subr.mxu0 0.0
  %386 = vmatpush1.msra.mxu0 0.0
  %387 = vmatprep.subr.mxu0 0.0
  %388 = vmatpush1.msra.mxu0 0.0
  %389 = vmatprep.subr.mxu0 0.0
  %390 = vmatpush1.msra.mxu0 0.0
  %391 = vmatprep.subr.mxu0 0.0
  %392 = vmatpush1.msra.mxu0 0.0
  %393 = vmatprep.subr.mxu0 0.0
  %394 = vmatpush1.msra.mxu0 0.0
  %395 = vmatprep.subr.mxu0 0.0
  %396 = vmatpush1.msra.mxu0 0.0
  %397 = vmatprep.subr.mxu0 0.0
  %398 = vmatpush1.msra.mxu0 0.0
  %399 = vmatprep.subr.mxu0 0.0
  %400 = vmatpush1.msra.mxu0 0.0
  %401 = vmatprep.subr.mxu0 0.0
  %402 = vmatpush1.msra.mxu0 0.0
  %403 = vmatprep.subr.mxu0 0.0
  %404 = vmatpush1.msra.mxu0 0.0
  %405 = vmatprep.subr.mxu0 0.0
  %406 = vmatpush1.msra.mxu0 0.0
  %407 = vmatprep.subr.mxu0 0.0
  %408 = vmatpush1.msra.mxu0 0.0
  %409 = vmatprep.subr.mxu0 0.0
  %410 = vmatpush1.msra.mxu0 0.0
  %411 = vmatprep.subr.mxu0 0.0
  %412 = vmatpush1.msra.mxu0 0.0
  %413 = vmatprep.subr.mxu0 0.0
  %414 = vmatpush1.msra.mxu0 0.0
  %415 = vmatprep.subr.mxu0 0.0
  %416 = vmatpush1.msra.mxu0 0.0
  %417 = vmatprep.subr.mxu0 0.0
  %418 = vmatpush1.msra.mxu0 0.0
  %419 = vmatprep.mubr.f32.mxu0 0.0
  %420 = vmatmul.mubr.f32.gmra.mrb[0].mxu0 %v255
  %v421 = vpop.f32.mrb[0].mxu0
  %v422 = vadd.f32 %v236, %v421
  %v423 = vpop.f32.mrb[0].mxu0
  %v424 = vadd.f32 %v236, %v423
  %425 = vmatprep.mubr.f32.mxu0 0.0
  %426 = vmatmul.mubr.f32.gmra.mrb[0].mxu0 %v258
  %v427 = vpop.f32.mrb[0].mxu0
  %v428 = vadd.f32 %v241, %v427
  %v429 = vpop.f32.mrb[0].mxu0
  %v430 = vadd.f32 %v241, %v429
  %431 = vmatprep.mubr.f32.mxu0 0.0
  %432 = vmatmul.mubr.f32.gmra.mrb[0].mxu0 %v261
  %v433 = vpop.f32.mrb[0].mxu0
  %v434 = vadd.f32 %v246, %v433
  %v435 = vpop.f32.mrb[0].mxu0
  %v436 = vadd.f32 %v246, %v435
  %437 = vmatprep.mubr.f32.mxu0 0.0
  %438 = vmatmul.mubr.f32.gmra.mrb[0].mxu0 %v264
  %v439 = vpop.f32.mrb[0].mxu0
  %v440 = vadd.f32 %v251, %v439
  %v441 = vpop.f32.mrb[0].mxu0
  %v442 = vadd.f32 %v251, %v441
  %443 = vdwg.mxu0
  %v444 = vtanh.pop %v333
  %v445 = vtanh.pop %v335
  %v446 = vtanh.pop %v422
  %v447 = vtanh.pop %v424
  %v448 = vtanh.pop %v339
  %v449 = vtanh.pop %v341
  %v450 = vtanh.pop %v428
  %v451 = vtanh.pop %v430
  %v452 = vtanh.pop %v345
  %v453 = vtanh.pop %v347
  %v454 = vtanh.pop %v434
  %v455 = vtanh.pop %v436
  %v456 = vtanh.pop %v351
  %v457 = vtanh.pop %v353
  %v458 = vtanh.pop %v440
  %v459 = vtanh.pop %v442
  %v460 = vld [vmem:[%s6] sm:$0xff]
  %v461 = vld [vmem:[%s6 + $0x8] sm:$0xff]
  %v462 = vld [vmem:[%s6 + $0x10] sm:$0xff]
  %v463 = vld [vmem:[%s6 + $0x18] sm:$0xff]
  %v464 = vld [vmem:[%s7] sm:$0xff]
  %v465 = vld [vmem:[%s7 + $0x8] sm:$0xff]
  %v466 = vld [vmem:[%s7 + $0x10] sm:$0xff]
  %v467 = vld [vmem:[%s7 + $0x18] sm:$0xff]
  %469 = vset.pattern.permute.xlu0 0
  %470 = vperm.xlu0 %469, %v464
  %v471 = vpop.permute.xlu0 %470
  %474 = vset.pattern.permute.xlu0 0
  %475 = vperm.xlu0 %474, %v465
  %v476 = vpop.permute.xlu0 %475
  %479 = vset.pattern.permute.xlu0 0
  %480 = vperm.xlu0 %479, %v466
  %v481 = vpop.permute.xlu0 %480
  %484 = vset.pattern.permute.xlu0 0
  %485 = vperm.xlu0 %484, %v467
  %v486 = vpop.permute.xlu0 %485
  %v489 = vsel %vm253, %v460, 0
  %v492 = vsel %vm253, %v461, 0
  %v495 = vsel %vm253, %v462, 0
  %v498 = vsel %vm253, %v463, 0
  %500 = vmatprep.subr.mxu0 %v445
  %501 = vmatpush1.msra.mxu0 %v444
  %502 = vmatprep.subr.mxu0 %v449
  %503 = vmatpush1.msra.mxu0 %v448
  %504 = vmatprep.subr.mxu0 %v453
  %505 = vmatpush1.msra.mxu0 %v452
  %506 = vmatprep.subr.mxu0 %v457
  %507 = vmatpush1.msra.mxu0 %v456
  %508 = vmatprep.subr.mxu0 0.0
  %509 = vmatpush1.msra.mxu0 0.0
  %510 = vmatprep.subr.mxu0 0.0
  %511 = vmatpush1.msra.mxu0 0.0
  %512 = vmatprep.subr.mxu0 0.0
  %513 = vmatpush1.msra.mxu0 0.0
  %514 = vmatprep.subr.mxu0 0.0
  %515 = vmatpush1.msra.mxu0 0.0
  %516 = vmatprep.subr.mxu0 0.0
  %517 = vmatpush1.msra.mxu0 0.0
  %518 = vmatprep.subr.mxu0 0.0
  %519 = vmatpush1.msra.mxu0 0.0
  %520 = vmatprep.subr.mxu0 0.0
  %521 = vmatpush1.msra.mxu0 0.0
  %522 = vmatprep.subr.mxu0 0.0
  %523 = vmatpush1.msra.mxu0 0.0
  %524 = vmatprep.subr.mxu0 0.0
  %525 = vmatpush1.msra.mxu0 0.0
  %526 = vmatprep.subr.mxu0 0.0
  %527 = vmatpush1.msra.mxu0 0.0
  %528 = vmatprep.subr.mxu0 0.0
  %529 = vmatpush1.msra.mxu0 0.0
  %530 = vmatprep.subr.mxu0 0.0
  %531 = vmatpush1.msra.mxu0 0.0
  %532 = vmatprep.subr.mxu0 0.0
  %533 = vmatpush1.msra.mxu0 0.0
  %534 = vmatprep.subr.mxu0 0.0
  %535 = vmatpush1.msra.mxu0 0.0
  %536 = vmatprep.subr.mxu0 0.0
  %537 = vmatpush1.msra.mxu0 0.0
  %538 = vmatprep.subr.mxu0 0.0
  %539 = vmatpush1.msra.mxu0 0.0
  %540 = vmatprep.subr.mxu0 0.0
  %541 = vmatpush1.msra.mxu0 0.0
  %542 = vmatprep.subr.mxu0 0.0
  %543 = vmatpush1.msra.mxu0 0.0
  %544 = vmatprep.subr.mxu0 0.0
  %545 = vmatpush1.msra.mxu0 0.0
  %546 = vmatprep.subr.mxu0 0.0
  %547 = vmatpush1.msra.mxu0 0.0
  %548 = vmatprep.subr.mxu0 0.0
  %549 = vmatpush1.msra.mxu0 0.0
  %550 = vmatprep.subr.mxu0 0.0
  %551 = vmatpush1.msra.mxu0 0.0
  %552 = vmatprep.subr.mxu0 0.0
  %553 = vmatpush1.msra.mxu0 0.0
  %554 = vmatprep.subr.mxu0 0.0
  %555 = vmatpush1.msra.mxu0 0.0
  %556 = vmatprep.subr.mxu0 0.0
  %557 = vmatpush1.msra.mxu0 0.0
  %558 = vmatprep.subr.mxu0 0.0
  %559 = vmatpush1.msra.mxu0 0.0
  %560 = vmatprep.subr.mxu0 0.0
  %561 = vmatpush1.msra.mxu0 0.0
  %562 = vmatprep.subr.mxu0 0.0
  %563 = vmatpush1.msra.mxu0 0.0
  %564 = vmatprep.mubr.f32.mxu0 0.0
  %565 = vmatmul.mubr.f32.gmra.mrb[0].mxu0 %v489
  %v566 = vpop.f32.mrb[0].mxu0
  %v567 = vadd.f32 %v471, %v566
  %v568 = vpop.f32.mrb[0].mxu0
  %v569 = vadd.f32 %v471, %v568
  %570 = vmatprep.mubr.f32.mxu0 0.0
  %571 = vmatmul.mubr.f32.gmra.mrb[0].mxu0 %v492
  %v572 = vpop.f32.mrb[0].mxu0
  %v573 = vadd.f32 %v476, %v572
  %v574 = vpop.f32.mrb[0].mxu0
  %v575 = vadd.f32 %v476, %v574
  %576 = vmatprep.mubr.f32.mxu0 0.0
  %577 = vmatmul.mubr.f32.gmra.mrb[0].mxu0 %v495
  %v578 = vpop.f32.mrb[0].mxu0
  %v579 = vadd.f32 %v481, %v578
  %v580 = vpop.f32.mrb[0].mxu0
  %v581 = vadd.f32 %v481, %v580
  %582 = vmatprep.mubr.f32.mxu0 0.0
  %583 = vmatmul.mubr.f32.gmra.mrb[0].mxu0 %v498
  %v584 = vpop.f32.mrb[0].mxu0
  %v585 = vadd.f32 %v486, %v584
  %v586 = vpop.f32.mrb[0].mxu0
  %v587 = vadd.f32 %v486, %v586
  %588 = vdwg.mxu0
  %589 = vmatprep.subr.mxu0 %v447
  %590 = vmatpush1.msra.mxu0 %v446
  %591 = vmatprep.subr.mxu0 %v451
  %592 = vmatpush1.msra.mxu0 %v450
  %593 = vmatprep.subr.mxu0 %v455
  %594 = vmatpush1.msra.mxu0 %v454
  %595 = vmatprep.subr.mxu0 %v459
  %596 = vmatpush1.msra.mxu0 %v458
  %597 = vmatprep.subr.mxu0 0.0
  %598 = vmatpush1.msra.mxu0 0.0
  %599 = vmatprep.subr.mxu0 0.0
  %600 = vmatpush1.msra.mxu0 0.0
  %601 = vmatprep.subr.mxu0 0.0
  %602 = vmatpush1.msra.mxu0 0.0
  %603 = vmatprep.subr.mxu0 0.0
  %604 = vmatpush1.msra.mxu0 0.0
  %605 = vmatprep.subr.mxu0 0.0
  %606 = vmatpush1.msra.mxu0 0.0
  %607 = vmatprep.subr.mxu0 0.0
  %608 = vmatpush1.msra.mxu0 0.0
  %609 = vmatprep.subr.mxu0 0.0
  %610 = vmatpush1.msra.mxu0 0.0
  %611 = vmatprep.subr.mxu0 0.0
  %612 = vmatpush1.msra.mxu0 0.0
  %613 = vmatprep.subr.mxu0 0.0
  %614 = vmatpush1.msra.mxu0 0.0
  %615 = vmatprep.subr.mxu0 0.0
  %616 = vmatpush1.msra.mxu0 0.0
  %617 = vmatprep.subr.mxu0 0.0
  %618 = vmatpush1.msra.mxu0 0.0
  %619 = vmatprep.subr.mxu0 0.0
  %620 = vmatpush1.msra.mxu0 0.0
  %621 = vmatprep.subr.mxu0 0.0
  %622 = vmatpush1.msra.mxu0 0.0
  %623 = vmatprep.subr.mxu0 0.0
  %624 = vmatpush1.msra.mxu0 0.0
  %625 = vmatprep.subr.mxu0 0.0
  %626 = vmatpush1.msra.mxu0 0.0
  %627 = vmatprep.subr.mxu0 0.0
  %628 = vmatpush1.msra.mxu0 0.0
  %629 = vmatprep.subr.mxu0 0.0
  %630 = vmatpush1.msra.mxu0 0.0
  %631 = vmatprep.subr.mxu0 0.0
  %632 = vmatpush1.msra.mxu0 0.0
  %633 = vmatprep.subr.mxu0 0.0
  %634 = vmatpush1.msra.mxu0 0.0
  %635 = vmatprep.subr.mxu0 0.0
  %636 = vmatpush1.msra.mxu0 0.0
  %637 = vmatprep.subr.mxu0 0.0
  %638 = vmatpush1.msra.mxu0 0.0
  %639 = vmatprep.subr.mxu0 0.0
  %640 = vmatpush1.msra.mxu0 0.0
  %641 = vmatprep.subr.mxu0 0.0
  %642 = vmatpush1.msra.mxu0 0.0
  %643 = vmatprep.subr.mxu0 0.0
  %644 = vmatpush1.msra.mxu0 0.0
  %645 = vmatprep.subr.mxu0 0.0
  %646 = vmatpush1.msra.mxu0 0.0
  %647 = vmatprep.subr.mxu0 0.0
  %648 = vmatpush1.msra.mxu0 0.0
  %649 = vmatprep.subr.mxu0 0.0
  %650 = vmatpush1.msra.mxu0 0.0
  %651 = vmatprep.subr.mxu0 0.0
  %652 = vmatpush1.msra.mxu0 0.0
  %653 = vmatprep.mubr.f32.mxu0 0.0
  %654 = vmatmul.mubr.f32.gmra.mrb[0].mxu0 %v489
  %v655 = vpop.f32.mrb[0].mxu0
  %v656 = vadd.f32 %v471, %v655
  %v657 = vpop.f32.mrb[0].mxu0
  %v658 = vadd.f32 %v471, %v657
  %659 = vmatprep.mubr.f32.mxu0 0.0
  %660 = vmatmul.mubr.f32.gmra.mrb[0].mxu0 %v492
  %v661 = vpop.f32.mrb[0].mxu0
  %v662 = vadd.f32 %v476, %v661
  %v663 = vpop.f32.mrb[0].mxu0
  %v664 = vadd.f32 %v476, %v663
  %665 = vmatprep.mubr.f32.mxu0 0.0
  %666 = vmatmul.mubr.f32.gmra.mrb[0].mxu0 %v495
  %v667 = vpop.f32.mrb[0].mxu0
  %v668 = vadd.f32 %v481, %v667
  %v669 = vpop.f32.mrb[0].mxu0
  %v670 = vadd.f32 %v481, %v669
  %671 = vmatprep.mubr.f32.mxu0 0.0
  %672 = vmatmul.mubr.f32.gmra.mrb[0].mxu0 %v498
  %v673 = vpop.f32.mrb[0].mxu0
  %v674 = vadd.f32 %v486, %v673
  %v675 = vpop.f32.mrb[0].mxu0
  %v676 = vadd.f32 %v486, %v675
  %677 = vdwg.mxu0
  %v678 = vtanh.pop %v567
  %v679 = vtanh.pop %v569
  %v680 = vtanh.pop %v656
  %v681 = vtanh.pop %v658
  %v682 = vtanh.pop %v573
  %v683 = vtanh.pop %v575
  %v684 = vtanh.pop %v662
  %v685 = vtanh.pop %v664
  %v686 = vtanh.pop %v579
  %v687 = vtanh.pop %v581
  %v688 = vtanh.pop %v668
  %v689 = vtanh.pop %v670
  %v690 = vtanh.pop %v585
  %v691 = vtanh.pop %v587
  %v692 = vtanh.pop %v674
  %v693 = vtanh.pop %v676
  %v694 = vld [vmem:[%s8] sm:$0xff]
  %v695 = vld [vmem:[%s8 + $0x8] sm:$0xff]
  %v696 = vld [vmem:[%s8 + $0x10] sm:$0xff]
  %v697 = vld [vmem:[%s8 + $0x18] sm:$0xff]
  %699 = vset.pattern.permute.xlu0 0
  %700 = vperm.xlu0 %699, %v694
  %v701 = vpop.permute.xlu0 %700
  %704 = vset.pattern.permute.xlu0 0
  %705 = vperm.xlu0 %704, %v695
  %v706 = vpop.permute.xlu0 %705
  %709 = vset.pattern.permute.xlu0 0
  %710 = vperm.xlu0 %709, %v696
  %v711 = vpop.permute.xlu0 %710
  %714 = vset.pattern.permute.xlu0 0
  %715 = vperm.xlu0 %714, %v697
  %v716 = vpop.permute.xlu0 %715
  %v718 = vmul.f32 %v701, %v678
  %v719 = vmul.f32 %v701, %v679
  %v720 = vmul.f32 %v701, %v680
  %v721 = vmul.f32 %v701, %v681
  %v722 = vmul.f32 %v706, %v682
  %v723 = vmul.f32 %v706, %v683
  %v724 = vmul.f32 %v706, %v684
  %v725 = vmul.f32 %v706, %v685
  %v726 = vmul.f32 %v711, %v686
  %v727 = vmul.f32 %v711, %v687
  %v728 = vmul.f32 %v711, %v688
  %v729 = vmul.f32 %v711, %v689
  %v730 = vmul.f32 %v716, %v690
  %v731 = vmul.f32 %v716, %v691
  %v732 = vmul.f32 %v716, %v692
  %v733 = vmul.f32 %v716, %v693
  %v734 = vadd.f32 %v718, %v722
  %v735 = vadd.f32 %v734, %v726
  %v736 = vadd.f32 %v735, %v730
  %v737 = vrot.slane %v736, 4
  %v738 = vadd.f32 %v736, %v737
  %v739 = vrot.slane %v738, 2
  %v740 = vadd.f32 %v738, %v739
  %v741 = vrot.slane %v740, 1
  %v742 = vadd.f32 %v740, %v741
  %v743 = vadd.f32 %v719, %v723
  %v744 = vadd.f32 %v743, %v727
  %v745 = vadd.f32 %v744, %v731
  %v746 = vrot.slane %v745, 4
  %v747 = vadd.f32 %v745, %v746
  %v748 = vrot.slane %v747, 2
  %v749 = vadd.f32 %v747, %v748
  %v750 = vrot.slane %v749, 1
  %v751 = vadd.f32 %v749, %v750
  %v752 = vadd.f32 %v720, %v724
  %v753 = vadd.f32 %v752, %v728
  %v754 = vadd.f32 %v753, %v732
  %v755 = vrot.slane %v754, 4
  %v756 = vadd.f32 %v754, %v755
  %v757 = vrot.slane %v756, 2
  %v758 = vadd.f32 %v756, %v757
  %v759 = vrot.slane %v758, 1
  %v760 = vadd.f32 %v758, %v759
  %v761 = vadd.f32 %v721, %v725
  %v762 = vadd.f32 %v761, %v729
  %v763 = vadd.f32 %v762, %v733
  %v764 = vrot.slane %v763, 4
  %v765 = vadd.f32 %v763, %v764
  %v766 = vrot.slane %v765, 2
  %v767 = vadd.f32 %v765, %v766
  %v768 = vrot.slane %v767, 1
  %v769 = vadd.f32 %v767, %v768
  %v770 = vld [vmem:[#allocation2] sm:$0x1]
  %772 = vset.pattern.permute.xlu0 0
  %773 = vperm.xlu0 %772, %v770
  %v774 = vpop.permute.xlu0 %773
  %v776 = vlaneseq
  %v777 = vshrl.u32 %v776, 7
  %v778 = vsub.s32 0, %v777
  %v779 = vrot.slane %v774, %v778
  %v780 = vadd.f32 %v742, %v779
  %v781 = vadd.f32 %v751, %v779
  %v782 = vadd.f32 %v760, %v779
  %v783 = vadd.f32 %v769, %v779
  %v788 = vcombine.low %v780, %v781
  %v789 = vcombine.low %v782, %v783
  %v791 = vunpack.c.l.s4 1966171168
  %v792 = vunpack.c.0.s8 %v791
  %v793 = vlaneseq
  %v794 = vshrl.u32 %v793, 7
  %v795 = vsub.s32 %v792, %v794
  %v796 = vrot.slane %v788, %v795
  %v798 = vunpack.c.l.s4 1966171168
  %v799 = vunpack.c.0.s8 %v798
  %v800 = vlaneseq
  %v801 = vshrl.u32 %v800, 7
  %v802 = vsub.s32 %v799, %v801
  %v803 = vrot.slane %v789, %v802
  %v804 = vcombine.low %v796, %v803
  %v806 = vunpack.c.l.s4 1966171168
  %v807 = vunpack.c.0.s8 %v806
  %v808 = vlaneseq
  %v809 = vshrl.u32 %v808, 7
  %v810 = vsub.s32 %v807, %v809
  %v811 = vrot.slane %v804, %v810
  %v813 = vlaneseq
  %vm814 = vcmp.ge.s32.totalorder %v813, 0
  %vm815 = vcmp.lt.s32.totalorder %v813, 512
  %vm816 = vmand %vm814, %vm815
  %817 = vst.msk [vmem:[%s10] sm:$0xf] %vm816, %v811
  // Predicated region
  $region42: #{fcn_forward.1} parent=0 // pred_check
    _
  $region43: #{fcn_forward.1} parent=0 // pred_check_branch
    %819 = sbr.rel (0) target = $region45
  $region44: #{fcn_forward.1} parent=0 // pred_region
    _
  $region45: #{fcn_forward.1} parent=0 // pred_fallthru
    _
  // Predicated region
  $region46: #{fcn_forward.1} parent=0 // pred_check
    _
  $region47: #{fcn_forward.1} parent=0 // pred_check_branch
    %821 = sbr.rel (0) target = $region49
  $region48: #{fcn_forward.1} parent=0 // pred_region
    _
  $region49: #{fcn_forward.1} parent=0 // pred_fallthru
    _

</llo_original>
